<compile_context>
chip_gen: v5e
topology: v5e:2x2
jax: 0.10.0
libtpu: 0.0.40
codegen_flags: <defaults>
</compile_context>

<pallas_src>
from typing import NamedTuple, Optional

import jax
import jax.numpy as jnp
from jax.experimental import pallas as pl
from jax.experimental.pallas import tpu as pltpu


def _round_up(a: int, b: int) -> int:
    return ((a + b - 1) // b) * b


def _sublane(dtype) -> int:
    """Native sublane multiple for a dtype (packed sub-32-bit tiles)."""
    return {4: 8, 2: 16, 1: 32}.get(jnp.dtype(dtype).itemsize, 8)


def _tpu_generation() -> str:
    try:
        kind = jax.devices()[0].device_kind.lower()
    except Exception:
        return "unknown"
    if "v7" in kind:
        return "v7x"
    if "v6" in kind:
        return "v6e"
    if "v5e" in kind or "v5 lite" in kind or "v5lite" in kind:
        return "v5e"
    return "unknown"


# Per-generation (tm_max, tn_max, tk_max, vmem_limit_bytes).
# Footprints (bf16 weights, f32 activations, double-buffered) stay well under
# the stated limit on each generation; "unknown" fits the 16 MiB scoped default.
_TILE_TABLE = {
    "v5e":     (512, 512, 1024, 96 * 1024 * 1024),
    "v6e":     (512, 1024, 1024, 100 * 1024 * 1024),
    "v7x":     (512, 512, 1024, 48 * 1024 * 1024),
    "unknown": (256, 512, 1024, None),
}


def _nk_tiles(in_features: int, out_features: int):
    gen = _tpu_generation()
    tm_max, tn0, tk0, vmem_limit = _TILE_TABLE[gen]
    tn = min(tn0, _round_up(out_features, 128))
    tk = min(tk0, _round_up(in_features, 128))
    N = _round_up(out_features, tn)
    K = _round_up(in_features, tk)
    return gen, tm_max, tn, tk, N, K, vmem_limit


class LinearParams(NamedTuple):
    w: jax.Array              # [K, N] pre-transposed, padded, MXU-dtype weight
    b: jax.Array              # [1, N] padded f32 bias
    in_features: int
    out_features: int
    tm_max: int
    tn: int
    tk: int
    gen: str
    vmem_limit: Optional[int]


def prepare_linear_params(weight: jax.Array, bias: jax.Array,
                          *, mxu_dtype=jnp.bfloat16) -> LinearParams:
    """One-time (outside the hot path) relayout of torch-layout parameters.

    weight: [out_features, in_features]  (PyTorch layout)
    bias  : [out_features]
    mxu_dtype: storage/compute dtype for the weight (bf16 default -> fast MXU
               path and half the HBM weight traffic). None keeps weight dtype.
    """
    out_features, in_features = weight.shape
    assert bias.shape == (out_features,)
    gen, tm_max, tn, tk, N, K, vmem_limit = _nk_tiles(in_features, out_features)

    store_dtype = weight.dtype if mxu_dtype is None else mxu_dtype
    w_t = weight.T.astype(store_dtype)            # [in, out] -> MXU-natural RHS
    if w_t.shape != (K, N):
        w_t = jnp.pad(w_t, ((0, K - in_features), (0, N - out_features)))

    b = bias.astype(jnp.float32)
    if N != out_features:
        b = jnp.pad(b, (0, N - out_features))
    b = b.reshape(1, N)

    return LinearParams(w=w_t, b=b, in_features=in_features,
                        out_features=out_features, tm_max=tm_max, tn=tn, tk=tk,
                        gen=gen, vmem_limit=vmem_limit)


def _make_kernel(mxu_dtype, direct_f32_out: bool):
    """Kernel factory. K is the innermost ("arbitrary") grid axis."""
    if direct_f32_out:
        # f32 output: accumulate directly into the resident output block.
        def kernel(x_ref, w_ref, b_ref, o_ref):
            k = pl.program_id(2)
            prod = jnp.dot(x_ref[...].astype(mxu_dtype),
                           w_ref[...].astype(mxu_dtype),
                           preferred_element_type=jnp.float32)

            @pl.when(k == 0)
            def _first():
                o_ref[...] = prod + b_ref[...]

            @pl.when(k > 0)
            def _rest():
                o_ref[...] += prod
        return kernel

    def kernel(x_ref, w_ref, b_ref, o_ref, acc_ref):
        k = pl.program_id(2)
        prod = jnp.dot(x_ref[...].astype(mxu_dtype),
                       w_ref[...].astype(mxu_dtype),
                       preferred_element_type=jnp.float32)

        @pl.when(k == 0)
        def _first():
            acc_ref[...] = prod        # overwrite, no zero-fill + RMW

        @pl.when(k > 0)
        def _rest():
            acc_ref[...] += prod

        @pl.when(k == pl.num_programs(2) - 1)
        def _finalize():
            o_ref[...] = (acc_ref[...] + b_ref[...]).astype(o_ref.dtype)
    return kernel


def linear(x: jax.Array, params: LinearParams) -> jax.Array:
    """y = x @ W.T + b with pre-prepared parameters (hot path)."""
    bsz, in_features = x.shape
    if in_features != params.in_features:
        raise ValueError("in_features mismatch")
    K, N = params.w.shape
    out_features = params.out_features
    out_dtype = x.dtype

    tn, tk = params.tn, params.tk
    sl = _sublane(x.dtype)
    tm = min(params.tm_max, _round_up(bsz, sl))

    # v7x megacore: ensure >= 2 parallel (M, N) output blocks where possible
    # so both TensorCores get work (halving keeps N/M tile-divisible).
    if params.gen == "v7x":
        m_blocks = _round_up(bsz, tm) // tm
        while m_blocks * (N // tn) < 2 and tn > 128 and tn % 256 == 0:
            tn //= 2
        while m_blocks * (N // tn) < 2 and tm > sl and tm % (2 * sl) == 0:
            tm //= 2
            m_blocks = _round_up(bsz, tm) // tm
    M = _round_up(bsz, tm)

    x_p = x
    if x.shape != (M, K):
        x_p = jnp.pad(x, ((0, M - bsz), (0, K - in_features)))

    # MXU feed dtype: the narrower of (weight, activation); f32 accumulation.
    w_dtype = params.w.dtype
    mxu_dtype = (w_dtype if jnp.dtype(w_dtype).itemsize <= jnp.dtype(x.dtype).itemsize
                 else x.dtype)
    direct_f32_out = (out_dtype == jnp.float32)
    kernel = _make_kernel(mxu_dtype, direct_f32_out)

    grid_m, grid_n, grid_k = M // tm, N // tn, K // tk

    # Real HBM traffic: x re-read per N tile, W (+bias) re-read per M tile.
    bytes_accessed = (
        M * K * x_p.dtype.itemsize * grid_n
        + K * N * params.w.dtype.itemsize * grid_m
        + N * params.b.dtype.itemsize * grid_m
        + M * N * jnp.dtype(out_dtype).itemsize
    )

    scratch = [] if direct_f32_out else [pltpu.VMEM((tm, tn), jnp.float32)]

    y_padded = pl.pallas_call(
        kernel,
        out_shape=jax.ShapeDtypeStruct((M, N), out_dtype),
        grid_spec=pltpu.PrefetchScalarGridSpec(
            num_scalar_prefetch=0,
            grid=(grid_m, grid_n, grid_k),
            in_specs=[
                pl.BlockSpec((tm, tk), lambda i, j, k: (i, k)),   # x tile
                pl.BlockSpec((tk, tn), lambda i, j, k: (k, j)),   # W^T tile
                pl.BlockSpec((1, tn), lambda i, j, k: (0, j)),    # bias tile
            ],
            out_specs=pl.BlockSpec((tm, tn), lambda i, j, k: (i, j)),
            scratch_shapes=scratch,
        ),
        compiler_params=pltpu.CompilerParams(
            dimension_semantics=("parallel", "parallel", "arbitrary"),
            vmem_limit_bytes=params.vmem_limit,
        ),
        cost_estimate=pl.CostEstimate(
            flops=2 * M * N * K,
            transcendentals=0,
            bytes_accessed=bytes_accessed,
        ),
    )(x_p, params.w, params.b)

    if (M, N) != (bsz, out_features):
        y_padded = y_padded[:bsz, :out_features]
    return y_padded


class PallasLinear:
    """Mirror of the PyTorch module: weight ~ randn(out, in), bias = zeros(out).

    The weight is relaid out (transpose + pad + bf16) once at construction, so
    the forward pass does no per-call parameter reshuffling.
    """

    def __init__(self, in_features: int, out_features: int, *, key,
                 dtype=jnp.float32, mxu_dtype=jnp.bfloat16):
        self.in_features = in_features
        self.out_features = out_features
        self.weight = jax.random.normal(key, (out_features, in_features), dtype=dtype)
        self.bias = jnp.zeros((out_features,), dtype=dtype)
        self.params = prepare_linear_params(self.weight, self.bias, mxu_dtype=mxu_dtype)

    def __call__(self, x: jax.Array) -> jax.Array:
        return linear(x, self.params)


if __name__ == "__main__":
    key = jax.random.PRNGKey(0)
    k1, k2, k3, k4, k5, k6 = jax.random.split(key, 6)

    # --- Test 1: module-sized shapes, default bf16 MXU feed -----------------
    in_features, out_features, bsz = 32, 16, 8
    layer = PallasLinear(in_features, out_features, key=k1)
    x = jax.random.normal(k2, (bsz, in_features), dtype=jnp.float32)
    y = layer(x)
    jax.block_until_ready(y)
    assert y.shape == (bsz, out_features)
    x_bf = x.astype(jnp.bfloat16).astype(jnp.float32)
    w_bf = layer.weight.astype(jnp.bfloat16).astype(jnp.float32)
    y_ref = x_bf @ w_bf.T + layer.bias
    assert jnp.allclose(y, y_ref, atol=1e-2, rtol=1e-2)

    # --- Test 2: multi-tile grid (M padded, K padded, several K steps) ------
    bsz2, in2, out2 = 640, 2304, 384
    x2 = jax.random.normal(k3, (bsz2, in2), dtype=jnp.float32)
    w2 = jax.random.normal(k4, (out2, in2), dtype=jnp.float32)
    b2 = jnp.linspace(-1.0, 1.0, out2, dtype=jnp.float32)
    p2 = prepare_linear_params(w2, b2)          # bf16 weights (default)
    y2 = linear(x2, p2)
    jax.block_until_ready(y2)
    y2_ref = (x2.astype(jnp.bfloat16).astype(jnp.float32)
              @ w2.T.astype(jnp.bfloat16).astype(jnp.float32)) + b2
    assert jnp.allclose(y2, y2_ref, atol=1e-2, rtol=1e-2)

    # --- Test 3: exact f32 MXU path (mxu_dtype=None) ------------------------
    x3 = jax.random.normal(k5, (64, 256), dtype=jnp.float32)
    w3 = jax.random.normal(k6, (128, 256), dtype=jnp.float32)
    b3 = jnp.zeros((128,), dtype=jnp.float32)
    p3 = prepare_linear_params(w3, b3, mxu_dtype=None)
    y3 = linear(x3, p3)
    jax.block_until_ready(y3)
    assert jnp.allclose(y3, x3 @ w3.T + b3, atol=2e-2, rtol=2e-2)

    # --- Test 4: bf16 activations/output (scratch-accumulator path) ---------
    x4 = x3.astype(jnp.bfloat16)
    y4 = linear(x4, p3)
    jax.block_until_ready(y4)
    y4_ref = (x4.astype(jnp.float32)
              @ w3.T.astype(jnp.bfloat16).astype(jnp.float32) + b3)
    assert jnp.allclose(y4.astype(jnp.float32), y4_ref, atol=3e-2, rtol=3e-2)

    print("KERNEL_OK")
</pallas_src>

<mosaic_0001>
module attributes {stable_mosaic.version = 11 : i64} {
  func.func @kernel(%arg0: i32, %arg1: i32, %arg2: i32, %arg3: memref<8x128xf32, #tpu.memory_space<vmem>>, %arg4: memref<128x128xbf16, #tpu.memory_space<vmem>>, %arg5: memref<1x128xf32, #tpu.memory_space<vmem>>, %arg6: memref<8x128xf32, #tpu.memory_space<vmem>>) attributes {dimension_semantics = [#tpu.dimension_semantics<parallel>, #tpu.dimension_semantics<parallel>, #tpu.dimension_semantics<arbitrary>], iteration_bounds = array<i64: 1, 1, 1>, scalar_prefetch = 0 : i64, scratch_operands = 0 : i64, tpu.core_type = #tpu.core_type<tc>, window_params = [{transform_indices = @transform_0, window_bounds = array<i64: 8, 128>}, {transform_indices = @transform_1, window_bounds = array<i64: 128, 128>}, {transform_indices = @transform_2, window_bounds = array<i64: 1, 128>}, {transform_indices = @transform_3, window_bounds = array<i64: 8, 128>}]} {
    %c0 = arith.constant 0 : index
    %c0_0 = arith.constant 0 : index
    %0 = vector.load %arg3[%c0, %c0_0] : memref<8x128xf32, #tpu.memory_space<vmem>>, vector<8x128xf32>
    %1 = arith.truncf %0 : vector<8x128xf32> to vector<8x128xbf16>
    %c0_1 = arith.constant 0 : index
    %c0_2 = arith.constant 0 : index
    %2 = vector.load %arg4[%c0_1, %c0_2] : memref<128x128xbf16, #tpu.memory_space<vmem>>, vector<128x128xbf16>
    %cst = arith.constant dense<0.000000e+00> : vector<8x128xf32>
    %3 = tpu.matmul %1, %2, %cst {dimension_numbers = #tpu.dot_dimension_numbers<[1], [0], [0], [1], [0, 0, 1, 1], [], []>} : vector<8x128xbf16>, vector<128x128xbf16>, vector<8x128xf32> -> vector<8x128xf32>
    %c0_i32 = arith.constant 0 : i32
    %4 = arith.cmpi eq, %arg2, %c0_i32 : i32
    %5 = arith.extui %4 : i1 to i32
    %c0_i32_3 = arith.constant 0 : i32
    %6 = arith.cmpi ne, %5, %c0_i32_3 : i32
    scf.if %6 {
      %c0_6 = arith.constant 0 : index
      %c0_7 = arith.constant 0 : index
      %10 = vector.load %arg5[%c0_6, %c0_7] : memref<1x128xf32, #tpu.memory_space<vmem>>, vector<1x128xf32>
      %11 = vector.broadcast %10 : vector<1x128xf32> to vector<8x128xf32>
      %12 = arith.addf %3, %11 : vector<8x128xf32>
      %c0_8 = arith.constant 0 : index
      %c0_9 = arith.constant 0 : index
      %13 = vector.load %arg6[%c0_8, %c0_9] : memref<8x128xf32, #tpu.memory_space<vmem>>, vector<8x128xf32>
      tpu.vector_store %arg6[%c0_8, %c0_9], %12 {strides = array<i32>} : memref<8x128xf32, #tpu.memory_space<vmem>>, vector<8x128xf32>,
    } else {
    }
    %c0_i32_4 = arith.constant 0 : i32
    %7 = arith.cmpi sgt, %arg2, %c0_i32_4 : i32
    %8 = arith.extui %7 : i1 to i32
    %c0_i32_5 = arith.constant 0 : i32
    %9 = arith.cmpi ne, %8, %c0_i32_5 : i32
    scf.if %9 {
      %c0_6 = arith.constant 0 : index
      %c0_7 = arith.constant 0 : index
      %10 = vector.load %arg6[%c0_6, %c0_7] : memref<8x128xf32, #tpu.memory_space<vmem>>, vector<8x128xf32>
      %11 = arith.addf %10, %3 : vector<8x128xf32>
      %c0_8 = arith.constant 0 : index
      %c0_9 = arith.constant 0 : index
      %12 = vector.load %arg6[%c0_8, %c0_9] : memref<8x128xf32, #tpu.memory_space<vmem>>, vector<8x128xf32>
      tpu.vector_store %arg6[%c0_8, %c0_9], %11 {strides = array<i32>} : memref<8x128xf32, #tpu.memory_space<vmem>>, vector<8x128xf32>,
    } else {
    }
    return
  }
  func.func @transform_0(%arg0: i32, %arg1: i32, %arg2: i32) -> (i32, i32) {
    %c0_i32 = arith.constant 0 : i32
    return %arg0, %arg2 : i32, i32
  }
  func.func @transform_1(%arg0: i32, %arg1: i32, %arg2: i32) -> (i32, i32) {
    %c0_i32 = arith.constant 0 : i32
    return %arg2, %arg1 : i32, i32
  }
  func.func @transform_2(%arg0: i32, %arg1: i32, %arg2: i32) -> (i32, i32) {
    %c0_i32 = arith.constant 0 : i32
    %c0_i32_0 = arith.constant 0 : i32
    return %c0_i32, %arg1 : i32, i32
  }
  func.func @transform_3(%arg0: i32, %arg1: i32, %arg2: i32) -> (i32, i32) {
    %c0_i32 = arith.constant 0 : i32
    return %arg0, %arg1 : i32, i32
  }
}

</mosaic_0001>

<llo_original>
// kernel: tpu_custom_call.1
$region0: #{tpu_custom_call.1}
  #allocation0 [shape = 'u32[]', space=smem, size = 0x4, offset = 0x4, fixed_abs, tag = 'smem constant byte address 0x4 - core index']
  #allocation1 [shape = 'u32[72,128]{1,0:T(1,128)}', space=vmem, size = 0x9000, scoped, tag = 'internal scratch']
  %s0 = inlined_call_operand.hbm [shape: f32[8,128], index: 0, kind: input, shape index: {}]
  %s1 = inlined_call_operand.hbm [shape: bf16[128,128], index: 1, kind: input, shape index: {}]
  %s2 = inlined_call_operand.vmem [shape: f32[1,128], index: 2, kind: input, shape index: {}]
  %s3 = inlined_call_operand.hbm [shape: f32[8,128], index: 3, kind: output, shape index: {}]
  %s4 = sld [smem:[#allocation0]]
  $region38: #{tpu_custom_call.1} parent=0
    _
  %s6 = ssub.s32 1, %s4
  %s7 = scalar_select 0, %s6, %s4
  $region1: #{tpu_custom_call.1} parent=0
    #allocation2 [shape = 'u8[4096]{0}', space=vmem, size = 0x1000, scoped, tag = 'input window, operand 0, single buffered']
    #allocation3 [shape = 's32[1]{0}', space=sflag, size = 0x4, scoped, tag = 'scoped memory for tpu_custom_call.1']
    #allocation4 [shape = 's32[1]{0}', space=sflag, size = 0x4, scoped, tag = 'scoped memory for tpu_custom_call.1']
    #allocation5 [shape = 'u8[32768]{0}', space=vmem, size = 0x8000, scoped, tag = 'input window, operand 1, single buffered']
    #allocation6 [shape = 's32[1]{0}', space=sflag, size = 0x4, scoped, tag = 'scoped memory for tpu_custom_call.1']
    #allocation7 [shape = 'u8[4096]{0}', space=vmem, size = 0x1000, scoped, tag = 'output window, operand 0, single buffered']
    %8 = vsyncpa [#allocation3], 0
    %9 = vsyncpa [#allocation6], 0
    %10 = vsyncpa [#allocation4], 0
    // Predicated region
    $region2: #{tpu_custom_call.1} parent=1 // pred_check
      _
    $region3: #{tpu_custom_call.1} parent=1 // pred_check_branch
      %12 = sbr.rel (0) target = $region5
    $region4: #{tpu_custom_call.1} parent=1 // pred_region
      %14 = vsyncadd [#allocation3], 0
      %s16 = sshll.u32 %s0, 4
      %s17 = int_to_ptr.hbm [resolvable:$true] %s16
      %s18 = sshll.u32 [#allocation2], 4
      %s19 = int_to_ptr.vmem [resolvable:$true] %s18
      %21 = dma.hbm_to_vmem [thread:$0]  %s17, 128, %s19, [#allocation3]
    $region5: #{tpu_custom_call.1} parent=1 // pred_fallthru
      _
    // Predicated region
    $region6: #{tpu_custom_call.1} parent=1 // pred_check
      _
    $region7: #{tpu_custom_call.1} parent=1 // pred_check_branch
      %23 = sbr.rel (0) target = $region9
    $region8: #{tpu_custom_call.1} parent=1 // pred_region
      %25 = vsyncadd [#allocation6], 0
      %s26 = sshll.u32 %s1, 4
      %s27 = int_to_ptr.hbm [resolvable:$true] %s26
      %s28 = sshll.u32 [#allocation5], 4
      %s29 = int_to_ptr.vmem [resolvable:$true] %s28
      %34 = dma.hbm_to_vmem [thread:$0]  %s27, 1024, %s29, [#allocation6], 64, 64, 4
    $region9: #{tpu_custom_call.1} parent=1 // pred_fallthru
      _
    // Predicated region
    $region10: #{tpu_custom_call.1} parent=1 // pred_check
      _
    $region11: #{tpu_custom_call.1} parent=1 // pred_check_branch
      %36 = sbr.rel (0) target = $region13
    $region12: #{tpu_custom_call.1} parent=1 // pred_region
      _
    $region13: #{tpu_custom_call.1} parent=1 // pred_fallthru
      _
    // Predicated region
    $region14: #{tpu_custom_call.1} parent=1 // pred_check
      _
    $region15: #{tpu_custom_call.1} parent=1 // pred_check_branch
      %38 = sbr.rel (0) target = $region17
    $region16: #{tpu_custom_call.1} parent=1 // pred_region
      %40 = dma.done [#allocation3], 128
    $region17: #{tpu_custom_call.1} parent=1 // pred_fallthru
      _
    // Predicated region
    $region18: #{tpu_custom_call.1} parent=1 // pred_check
      _
    $region19: #{tpu_custom_call.1} parent=1 // pred_check_branch
      %42 = sbr.rel (0) target = $region21
    $region20: #{tpu_custom_call.1} parent=1 // pred_region
      %44 = dma.done [#allocation6], 1024
    $region21: #{tpu_custom_call.1} parent=1 // pred_fallthru
      _
    %v45 = vld [vmem:[#allocation2] sm:$0xff]
    %v46 = vpack.c.bf16 %v45, %v45
    %v47 = vld [vmem:[#allocation5] sm:$0xf]
    %v48 = vld [vmem:[#allocation5 + $0x4] sm:$0xf]
    %v49 = vld [vmem:[#allocation5 + $0x8] sm:$0xf]
    %v50 = vld [vmem:[#allocation5 + $0xc] sm:$0xf]
    %v51 = vld [vmem:[#allocation5 + $0x10] sm:$0xf]
    %v52 = vld [vmem:[#allocation5 + $0x14] sm:$0xf]
    %v53 = vld [vmem:[#allocation5 + $0x18] sm:$0xf]
    %v54 = vld [vmem:[#allocation5 + $0x1c] sm:$0xf]
    %v55 = vld [vmem:[#allocation5 + $0x20] sm:$0xf]
    %v56 = vld [vmem:[#allocation5 + $0x24] sm:$0xf]
    %v57 = vld [vmem:[#allocation5 + $0x28] sm:$0xf]
    %v58 = vld [vmem:[#allocation5 + $0x2c] sm:$0xf]
    %v59 = vld [vmem:[#allocation5 + $0x30] sm:$0xf]
    %v60 = vld [vmem:[#allocation5 + $0x34] sm:$0xf]
    %v61 = vld [vmem:[#allocation5 + $0x38] sm:$0xf]
    %v62 = vld [vmem:[#allocation5 + $0x3c] sm:$0xf]
    %v79 = vunpack.c.l.b16 %v47
    %v80 = vunpack.c.l.b16 %v48
    %v81 = vunpack.c.l.b16 %v49
    %v82 = vunpack.c.l.b16 %v50
    %v83 = vunpack.c.l.b16 %v51
    %v84 = vunpack.c.l.b16 %v52
    %v85 = vunpack.c.l.b16 %v53
    %v86 = vunpack.c.l.b16 %v54
    %v87 = vunpack.c.l.b16 %v55
    %v88 = vunpack.c.l.b16 %v56
    %v89 = vunpack.c.l.b16 %v57
    %v90 = vunpack.c.l.b16 %v58
    %v91 = vunpack.c.l.b16 %v59
    %v92 = vunpack.c.l.b16 %v60
    %v93 = vunpack.c.l.b16 %v61
    %v94 = vunpack.c.l.b16 %v62
    %v95 = vpack.c.b16 %v80, %v79
    %v96 = vpack.c.b16 %v82, %v81
    %v97 = vpack.c.b16 %v84, %v83
    %v98 = vpack.c.b16 %v86, %v85
    %v99 = vpack.c.b16 %v88, %v87
    %v100 = vpack.c.b16 %v90, %v89
    %v101 = vpack.c.b16 %v92, %v91
    %v102 = vpack.c.b16 %v94, %v93
    %111 = vmatpush.bf16.msra.mxu0 %v102
    %112 = vmatpush.bf16.msra.mxu0 %v101
    %113 = vmatpush.bf16.msra.mxu0 %v100
    %114 = vmatpush.bf16.msra.mxu0 %v99
    %115 = vmatpush.bf16.msra.mxu0 %v98
    %116 = vmatpush.bf16.msra.mxu0 %v97
    %117 = vmatpush.bf16.msra.mxu0 %v96
    %118 = vmatpush.bf16.msra.mxu0 %v95
    %119 = vmatmul.bf16.gmra.mxu0 %v46
    %v120 = vpop.f32.mrf.mxu0
    %v121 = vadd.f32 0.0, %v120
    %v122 = vpop.f32.mrf.mxu0
    %123 = vdwg.mxu0
    %p124 = scmp.eq.s32.totalorder 0, 0
    // Predicated region
    $region22: #{tpu_custom_call.1} parent=1 // pred_check
      %p125 = pneg %p124
    $region23: #{tpu_custom_call.1} parent=1 // pred_check_branch
      %127 = sbr.rel (%p125) target = $region25
    $region24: #{tpu_custom_call.1} parent=1 // pred_region
      %v128 = vld [vmem:[%s2] sm:$0x1]
      %v130 = vperm.slane %v128, 0
      %v132 = vadd.f32 %v121, %v130
      %133 = vst [vmem:[#allocation7] sm:$0xff] %v132
    $region25: #{tpu_custom_call.1} parent=1 // pred_fallthru
      _
    %p134 = scmp.gt.s32.totalorder 0, 0
    // Predicated region
    $region26: #{tpu_custom_call.1} parent=1 // pred_check
      %p135 = pneg %p134
    $region27: #{tpu_custom_call.1} parent=1 // pred_check_branch
      %137 = sbr.rel (%p135) target = $region29
    $region28: #{tpu_custom_call.1} parent=1 // pred_region
      %v138 = vld [vmem:[#allocation7] sm:$0xff]
      %v139 = vadd.f32 %v138, %v121
      %140 = vst [vmem:[#allocation7] sm:$0xff] %v139
    $region29: #{tpu_custom_call.1} parent=1 // pred_fallthru
      _
    // Predicated region
    $region30: #{tpu_custom_call.1} parent=1 // pred_check
      _
    $region31: #{tpu_custom_call.1} parent=1 // pred_check_branch
      %142 = sbr.rel (0) target = $region33
    $region32: #{tpu_custom_call.1} parent=1 // pred_region
      %144 = vsyncadd [#allocation4], 0
      %s146 = sshll.u32 [#allocation7], 4
      %s147 = int_to_ptr.vmem [resolvable:$true] %s146
      %s148 = sshll.u32 %s3, 4
      %s149 = int_to_ptr.hbm [resolvable:$true] %s148
      %151 = dma.vmem_to_hbm [thread:$0]  %s147, 128, %s149, [#allocation4]
    $region33: #{tpu_custom_call.1} parent=1 // pred_fallthru
      _
    // Predicated region
    $region34: #{tpu_custom_call.1} parent=1 // pred_check
      _
    $region35: #{tpu_custom_call.1} parent=1 // pred_check_branch
      %153 = sbr.rel (0) target = $region37
    $region36: #{tpu_custom_call.1} parent=1 // pred_region
      %155 = dma.done [#allocation4], 128
    $region37: #{tpu_custom_call.1} parent=1 // pred_fallthru
      _
    %156 = vsyncpa [#allocation3], 1
    %157 = vsyncpa [#allocation6], 1
    %158 = vsyncpa [#allocation4], 1

</llo_original>
